<compile_context>
chip_gen: v5e
topology: v5e:2x2
jax: 0.10.0
libtpu: 0.0.40
codegen_flags: <defaults>
</compile_context>

<pallas_src>
import functools

import jax
import jax.numpy as jnp
from jax import lax
from jax.experimental import pallas as pl
from jax.experimental.pallas import tpu as pltpu

_LN_EPS = 1e-5  # torch nn.LayerNorm default


# ---------------------------------------------------------------------------
# In-kernel fused body for one conv block:
#   Conv1d(k=3, pad=1) -> LayerNorm -> ReLU     (Dropout = identity at eval)
# Operates on a flattened (N, C) slab where N = Bb * T rows; channels on lanes.
# ---------------------------------------------------------------------------
def _conv3_ln_relu(x, seq_len, w_ref, b_ref, g_ref, beta_ref):
    """x: (N, Cin) native dtype; w_ref: (3, Cin, Cout); returns (N, Cout) f32."""
    N = x.shape[0]

    # Shifted operands via XLU roll (no concatenate copies).  Rows that would
    # read across a sequence boundary (t==0 for the t-1 tap, t==T-1 for the
    # t+1 tap) are zeroed -> exactly torch Conv1d padding=1, and it also stops
    # bleed between the Bb batch elements stacked along the row axis.
    x_prev = pltpu.roll(x, 1, 0)          # row i <- x[i-1]
    x_next = pltpu.roll(x, N - 1, 0)      # row i <- x[i+1]  (N-1 == -1 mod N)
    pos = lax.broadcasted_iota(jnp.int32, (N, 1), 0) % seq_len
    zero = jnp.zeros((), x.dtype)
    x_prev = jnp.where(pos == 0, zero, x_prev)
    x_next = jnp.where(pos == seq_len - 1, zero, x_next)

    # Three tap matmuls, accumulated in f32 on the MXU.
    y = (
        jnp.dot(x_prev, w_ref[0], preferred_element_type=jnp.float32)
        + jnp.dot(x, w_ref[1], preferred_element_type=jnp.float32)
        + jnp.dot(x_next, w_ref[2], preferred_element_type=jnp.float32)
        + b_ref[...]                                   # (1, Cout) f32
    )

    # LayerNorm over the channel (lane) axis, in f32.
    mean = jnp.mean(y, axis=-1, keepdims=True)
    cent = y - mean
    var = jnp.mean(cent * cent, axis=-1, keepdims=True)
    y = cent * lax.rsqrt(var + _LN_EPS) * g_ref[...] + beta_ref[...]

    # ReLU (nn.Dropout is identity in eval mode).
    return jnp.maximum(y, 0.0)


# ---------------------------------------------------------------------------
# Single fused kernel: block1 -> block2 -> Linear(F,1) -> ReLU
# ---------------------------------------------------------------------------
def _fused_kernel(x_ref, w1_ref, b1_ref, g1_ref, bt1_ref,
                  w2_ref, b2_ref, g2_ref, bt2_ref,
                  wl_ref, bl_ref, o_ref, *, seq_len):
    x = x_ref[...]                                           # (N, E) native dtype

    act1 = _conv3_ln_relu(x, seq_len, w1_ref, b1_ref, g1_ref, bt1_ref)   # (N, F) f32
    act1 = act1.astype(x.dtype)          # keep MXU inputs in the native dtype
    act2 = _conv3_ln_relu(act1, seq_len, w2_ref, b2_ref, g2_ref, bt2_ref)  # (N, F) f32

    # Final Linear(F, 1) + ReLU as VPU multiply + lane reduction; write the
    # result lane-dense, one (T,) row per batch element (no (T,1) column store).
    wl = wl_ref[...]                                         # (1, F) f32
    bl = bl_ref[...]                                         # (1, 1) f32
    n_batch = o_ref.shape[0]
    for i in range(n_batch):                                 # tiny static epilogue loop
        rows = act2[i * seq_len:(i + 1) * seq_len, :]        # (T, F)
        d = jnp.sum(rows * wl, axis=-1, keepdims=True) + bl  # (T, 1)
        o_ref[i, :] = jnp.maximum(d[:, 0], 0.0).astype(o_ref.dtype)


# ---------------------------------------------------------------------------
# Batch-block size selection (Bb*T rows per grid step, VMEM-budgeted).
# ---------------------------------------------------------------------------
def _pick_batch_block(batch, seq, e_dim, f_dim, itemsize):
    budget = 24 * 1024 * 1024                                # stay under scoped VMEM
    weight_bytes = 2 * (3 * e_dim * f_dim + 3 * f_dim * f_dim) * itemsize + 8 * f_dim * 4
    avail = max(budget - weight_bytes, 1 << 20)
    # f32 intermediates (x_prev/x_next, two block outputs, temps) + I/O buffers.
    per_row = 4 * (3 * e_dim + 6 * f_dim) + 2 * itemsize * (e_dim + 1)
    max_rows = min(avail // per_row, 4096)
    best = 1
    for d in range(1, batch + 1):
        if batch % d == 0 and d * seq <= max_rows:
            best = d
    return best


def _fused_forward(x, w1, b1, g1, bt1, w2, b2, g2, bt2, wl, bl):
    B, T, E = x.shape
    F = w1.shape[-1]
    dt = x.dtype

    Bb = _pick_batch_block(B, T, E, F, dt.itemsize)
    nb = B // Bb
    N = Bb * T

    # Present the input as (nb, Bb*T, E) and the output as (nb, Bb, T) so the
    # kernel never needs in-kernel reshapes and every BlockSpec keeps its last
    # two dims equal to the full array dims (layout-constraint safe).
    xr = x.reshape(nb, N, E)
    w1 = w1.astype(dt)      # feed MXU in the activation dtype (bf16-friendly)
    w2 = w2.astype(dt)

    cost = pl.CostEstimate(
        flops=int(B * T * (6 * E * F + 6 * F * F + 18 * F)),
        transcendentals=int(2 * B * T),
        bytes_accessed=int(dt.itemsize * (B * T * E + B * T)
                           + 4 * (w1.size + w2.size + 8 * F + 1)),
    )

    out = pl.pallas_call(
        functools.partial(_fused_kernel, seq_len=T),
        out_shape=jax.ShapeDtypeStruct((nb, Bb, T), dt),
        grid=(nb,),
        in_specs=[
            pl.BlockSpec((None, N, E), lambda b: (b, 0, 0)),
            pl.BlockSpec((3, E, F), lambda b: (0, 0, 0)),
            pl.BlockSpec((1, F), lambda b: (0, 0)),
            pl.BlockSpec((1, F), lambda b: (0, 0)),
            pl.BlockSpec((1, F), lambda b: (0, 0)),
            pl.BlockSpec((3, F, F), lambda b: (0, 0, 0)),
            pl.BlockSpec((1, F), lambda b: (0, 0)),
            pl.BlockSpec((1, F), lambda b: (0, 0)),
            pl.BlockSpec((1, F), lambda b: (0, 0)),
            pl.BlockSpec((1, F), lambda b: (0, 0)),
            pl.BlockSpec((1, 1), lambda b: (0, 0)),
        ],
        out_specs=pl.BlockSpec((None, Bb, T), lambda b: (b, 0, 0)),
        compiler_params=pltpu.CompilerParams(dimension_semantics=("parallel",)),
        cost_estimate=cost,
    )(xr, w1, b1, g1, bt1, w2, b2, g2, bt2, wl, bl)

    return out.reshape(B, T)


# ---------------------------------------------------------------------------
# Module wrapper mirroring the PyTorch DurationPredictor (eval mode).
# Parameters use torch layouts: conv weights (Cout, Cin, K=3), linear (1, F).
# ---------------------------------------------------------------------------
class DurationPredictor:

    def __init__(self, conv1_w, conv1_b, ln1_g, ln1_b,
                 conv2_w, conv2_b, ln2_g, ln2_b, lin_w, lin_b):
        # Conv1d weight (Cout, Cin, K) -> stacked tap matrices (K, Cin, Cout),
        # done ONCE on the tiny weights instead of transposing activations.
        self.w1 = jnp.transpose(conv1_w, (2, 1, 0))
        self.b1 = conv1_b.reshape(1, -1).astype(jnp.float32)
        self.g1 = ln1_g.reshape(1, -1).astype(jnp.float32)
        self.bt1 = ln1_b.reshape(1, -1).astype(jnp.float32)
        self.w2 = jnp.transpose(conv2_w, (2, 1, 0))
        self.b2 = conv2_b.reshape(1, -1).astype(jnp.float32)
        self.g2 = ln2_g.reshape(1, -1).astype(jnp.float32)
        self.bt2 = ln2_b.reshape(1, -1).astype(jnp.float32)
        self.wl = lin_w.reshape(1, -1).astype(jnp.float32)   # (1, F) row for VPU reduce
        self.bl = lin_b.reshape(1, 1).astype(jnp.float32)

    def __call__(self, encoder_output):
        out = _fused_forward(encoder_output,
                             self.w1, self.b1, self.g1, self.bt1,
                             self.w2, self.b2, self.g2, self.bt2,
                             self.wl, self.bl)               # (B, T)
        out = jnp.squeeze(out)        # torch .squeeze()
        return out[None]              # eval mode: .unsqueeze(0)


# ---------------------------------------------------------------------------
# Pure-JAX reference (independent formulation) for correctness checking.
# ---------------------------------------------------------------------------
def _reference_forward(x, conv1_w, conv1_b, ln1_g, ln1_b,
                       conv2_w, conv2_b, ln2_g, ln2_b, lin_w, lin_b,
                       precision=lax.Precision.HIGHEST):
    def conv1d_same(x_btc, w, b):          # w: (Cout, Cin, 3), torch semantics
        T = x_btc.shape[1]
        xp = jnp.pad(x_btc, ((0, 0), (1, 1), (0, 0)))
        out = b
        for k in range(w.shape[-1]):
            out = out + jnp.einsum("btc,oc->bto", xp[:, k:k + T, :], w[:, :, k],
                                   precision=precision)
        return out

    def ln_relu(y, g, bta):
        m = jnp.mean(y, axis=-1, keepdims=True)
        v = jnp.mean((y - m) ** 2, axis=-1, keepdims=True)
        return jnp.maximum((y - m) / jnp.sqrt(v + _LN_EPS) * g + bta, 0.0)

    h = ln_relu(conv1d_same(x, conv1_w, conv1_b), ln1_g, ln1_b)
    h = ln_relu(conv1d_same(h, conv2_w, conv2_b), ln2_g, ln2_b)
    out = jnp.maximum(
        jnp.einsum("btf,of->bto", h, lin_w, precision=precision) + lin_b, 0.0)
    return jnp.squeeze(out)[None]


if __name__ == "__main__":
    key = jax.random.PRNGKey(0)
    B, T = 2, 16          # batch, seq
    E, F, K = 32, 64, 3   # encoder_dim, duration_predictor_filter_size, kernel_size
    ks = jax.random.split(key, 11)

    x = jax.random.normal(ks[0], (B, T, E), jnp.float32)
    conv1_w = 0.2 * jax.random.normal(ks[1], (F, E, K), jnp.float32)
    conv1_b = 0.1 * jax.random.normal(ks[2], (F,), jnp.float32)
    ln1_g = 1.0 + 0.1 * jax.random.normal(ks[3], (F,), jnp.float32)
    ln1_b = 0.1 * jax.random.normal(ks[4], (F,), jnp.float32)
    conv2_w = 0.2 * jax.random.normal(ks[5], (F, F, K), jnp.float32)
    conv2_b = 0.1 * jax.random.normal(ks[6], (F,), jnp.float32)
    ln2_g = 1.0 + 0.1 * jax.random.normal(ks[7], (F,), jnp.float32)
    ln2_b = 0.1 * jax.random.normal(ks[8], (F,), jnp.float32)
    lin_w = 0.2 * jax.random.normal(ks[9], (1, F), jnp.float32)
    lin_b = 0.1 * jax.random.normal(ks[10], (1,), jnp.float32)

    model = DurationPredictor(conv1_w, conv1_b, ln1_g, ln1_b,
                              conv2_w, conv2_b, ln2_g, ln2_b, lin_w, lin_b)
    out = jax.block_until_ready(model(x))

    params = (conv1_w, conv1_b, ln1_g, ln1_b,
              conv2_w, conv2_b, ln2_g, ln2_b, lin_w, lin_b)
    ref_hi = jax.block_until_ready(
        _reference_forward(x, *params, precision=lax.Precision.HIGHEST))
    ref_lo = _reference_forward(x, *params, precision=lax.Precision.DEFAULT)

    assert out.shape == ref_hi.shape == (1, B, T), (out.shape, ref_hi.shape)
    # Tolerance anchored to this platform's default-vs-highest MXU precision
    # gap: tight (2e-3) when f32 matmuls are exact, but never fails just
    # because of the hardware's default matmul precision mode.
    mxu_gap = float(jnp.max(jnp.abs(ref_hi - ref_lo)))
    tol = max(2e-3, 3.0 * mxu_gap)
    max_err = float(jnp.max(jnp.abs(out - ref_hi)))
    assert max_err <= tol, f"mismatch vs reference: max abs err {max_err} > tol {tol}"
    print("KERNEL_OK")
</pallas_src>

<mosaic_0001>
module attributes {stable_mosaic.version = 11 : i64} {
  func.func @_fused_kernel(%arg0: i32, %arg1: memref<1x32x32xf32, #tpu.memory_space<vmem>>, %arg2: memref<3x32x64xf32, #tpu.memory_space<vmem>>, %arg3: memref<1x64xf32, #tpu.memory_space<vmem>>, %arg4: memref<1x64xf32, #tpu.memory_space<vmem>>, %arg5: memref<1x64xf32, #tpu.memory_space<vmem>>, %arg6: memref<3x64x64xf32, #tpu.memory_space<vmem>>, %arg7: memref<1x64xf32, #tpu.memory_space<vmem>>, %arg8: memref<1x64xf32, #tpu.memory_space<vmem>>, %arg9: memref<1x64xf32, #tpu.memory_space<vmem>>, %arg10: memref<1x64xf32, #tpu.memory_space<vmem>>, %arg11: memref<1x1xf32, #tpu.memory_space<vmem>>, %arg12: memref<1x2x16xf32, #tpu.memory_space<vmem>>) attributes {dimension_semantics = [#tpu.dimension_semantics<parallel>], iteration_bounds = array<i64: 1>, scalar_prefetch = 0 : i64, scratch_operands = 0 : i64, tpu.core_type = #tpu.core_type<tc>, window_params = [{transform_indices = @transform_0, window_bounds = array<i64: 1, 32, 32>}, {pipeline_mode = #tpu.pipeline_mode<synchronous>, transform_indices = @transform_1, window_bounds = array<i64: 3, 32, 64>}, {pipeline_mode = #tpu.pipeline_mode<synchronous>, transform_indices = @transform_2, window_bounds = array<i64: 1, 64>}, {pipeline_mode = #tpu.pipeline_mode<synchronous>, transform_indices = @transform_3, window_bounds = array<i64: 1, 64>}, {pipeline_mode = #tpu.pipeline_mode<synchronous>, transform_indices = @transform_4, window_bounds = array<i64: 1, 64>}, {pipeline_mode = #tpu.pipeline_mode<synchronous>, transform_indices = @transform_5, window_bounds = array<i64: 3, 64, 64>}, {pipeline_mode = #tpu.pipeline_mode<synchronous>, transform_indices = @transform_6, window_bounds = array<i64: 1, 64>}, {pipeline_mode = #tpu.pipeline_mode<synchronous>, transform_indices = @transform_7, window_bounds = array<i64: 1, 64>}, {pipeline_mode = #tpu.pipeline_mode<synchronous>, transform_indices = @transform_8, window_bounds = array<i64: 1, 64>}, {pipeline_mode = #tpu.pipeline_mode<synchronous>, transform_indices = @transform_9, window_bounds = array<i64: 1, 64>}, {pipeline_mode = #tpu.pipeline_mode<synchronous>, transform_indices = @transform_10, window_bounds = array<i64: 1, 1>}, {transform_indices = @transform_11, window_bounds = array<i64: 1, 2, 16>}]} {
    %c0 = arith.constant 0 : index
    %c0_0 = arith.constant 0 : index
    %c0_1 = arith.constant 0 : index
    %0 = vector.load %arg1[%c0, %c0_0, %c0_1] : memref<1x32x32xf32, #tpu.memory_space<vmem>>, vector<1x32x32xf32>
    %1 = vector.shape_cast %0 : vector<1x32x32xf32> to vector<32x32xf32>
    %c1_i32 = arith.constant 1 : i32
    %2 = tpu.dynamic_rotate %1 by %c1_i32 dim 0 : vector<32x32xf32>, i32 -> vector<32x32xf32>
    %c31_i32 = arith.constant 31 : i32
    %3 = tpu.dynamic_rotate %1 by %c31_i32 dim 0 : vector<32x32xf32>, i32 -> vector<32x32xf32>
    %4 = tpu.iota {dimensions = array<i32: 0>} : vector<32x1xi32>
    %c16_i32 = arith.constant 16 : i32
    %c0_i32 = arith.constant 0 : i32
    %5 = arith.cmpi eq, %c16_i32, %c0_i32 : i32
    %c1_i32_2 = arith.constant 1 : i32
    %6 = arith.select %5, %c1_i32_2, %c16_i32 : i32
    %7 = vector.broadcast %6 : i32 to vector<32x1xi32>
    %8 = arith.remsi %4, %7 : vector<32x1xi32>
    %c0_i32_3 = arith.constant 0 : i32
    %9 = vector.broadcast %c0_i32_3 : i32 to vector<32x1xi32>
    %10 = arith.cmpi ne, %8, %9 : vector<32x1xi32>
    %c0_i32_4 = arith.constant 0 : i32
    %11 = vector.broadcast %c0_i32_4 : i32 to vector<32x1xi32>
    %12 = arith.cmpi slt, %8, %11 : vector<32x1xi32>
    %c0_i32_5 = arith.constant 0 : i32
    %13 = arith.cmpi slt, %6, %c0_i32_5 : i32
    %14 = vector.broadcast %13 : i1 to vector<32x1xi1>
    %15 = vector.broadcast %14 : vector<32x1xi1> to vector<32x1xi1>
    %16 = arith.xori %12, %15 : vector<32x1xi1>
    %17 = arith.andi %16, %10 : vector<32x1xi1>
    %18 = vector.broadcast %6 : i32 to vector<32x1xi32>
    %19 = arith.addi %8, %18 : vector<32x1xi32>
    %20 = arith.select %17, %19, %8 : vector<32x1xi1>, vector<32x1xi32>
    %c0_i32_6 = arith.constant 0 : i32
    %21 = vector.broadcast %c0_i32_6 : i32 to vector<32x1xi32>
    %22 = arith.cmpi eq, %20, %21 : vector<32x1xi32>
    %cst = arith.constant 0.000000e+00 : f32
    %23 = vector.shape_cast %22 : vector<32x1xi1> to vector<32x1xi1>
    %24 = vector.broadcast %23 : vector<32x1xi1> to vector<32x32xi1>
    %25 = vector.broadcast %cst : f32 to vector<32x32xf32>
    %26 = arith.select %24, %25, %2 : vector<32x32xi1>, vector<32x32xf32>
    %c15_i32 = arith.constant 15 : i32
    %27 = vector.broadcast %c15_i32 : i32 to vector<32x1xi32>
    %28 = arith.cmpi eq, %20, %27 : vector<32x1xi32>
    %cst_7 = arith.constant 0.000000e+00 : f32
    %29 = vector.shape_cast %28 : vector<32x1xi1> to vector<32x1xi1>
    %30 = vector.broadcast %29 : vector<32x1xi1> to vector<32x32xi1>
    %31 = vector.broadcast %cst_7 : f32 to vector<32x32xf32>
    %32 = arith.select %30, %31, %3 : vector<32x32xi1>, vector<32x32xf32>
    %c0_8 = arith.constant 0 : index
    %c0_9 = arith.constant 0 : index
    %c0_10 = arith.constant 0 : index
    %33 = vector.load %arg2[%c0_8, %c0_9, %c0_10] : memref<3x32x64xf32, #tpu.memory_space<vmem>>, vector<1x32x64xf32>
    %34 = vector.shape_cast %33 : vector<1x32x64xf32> to vector<32x64xf32>
    %cst_11 = arith.constant dense<0.000000e+00> : vector<32x64xf32>
    %35 = tpu.matmul %26, %34, %cst_11 {dimension_numbers = #tpu.dot_dimension_numbers<[1], [0], [0], [1], [0, 0, 1, 1], [], []>} : vector<32x32xf32>, vector<32x64xf32>, vector<32x64xf32> -> vector<32x64xf32>
    %c1 = arith.constant 1 : index
    %c0_12 = arith.constant 0 : index
    %c0_13 = arith.constant 0 : index
    %36 = vector.load %arg2[%c1, %c0_12, %c0_13] : memref<3x32x64xf32, #tpu.memory_space<vmem>>, vector<1x32x64xf32>
    %37 = vector.shape_cast %36 : vector<1x32x64xf32> to vector<32x64xf32>
    %cst_14 = arith.constant dense<0.000000e+00> : vector<32x64xf32>
    %38 = tpu.matmul %1, %37, %cst_14 {dimension_numbers = #tpu.dot_dimension_numbers<[1], [0], [0], [1], [0, 0, 1, 1], [], []>} : vector<32x32xf32>, vector<32x64xf32>, vector<32x64xf32> -> vector<32x64xf32>
    %39 = arith.addf %35, %38 : vector<32x64xf32>
    %c2 = arith.constant 2 : index
    %c0_15 = arith.constant 0 : index
    %c0_16 = arith.constant 0 : index
    %40 = vector.load %arg2[%c2, %c0_15, %c0_16] : memref<3x32x64xf32, #tpu.memory_space<vmem>>, vector<1x32x64xf32>
    %41 = vector.shape_cast %40 : vector<1x32x64xf32> to vector<32x64xf32>
    %cst_17 = arith.constant dense<0.000000e+00> : vector<32x64xf32>
    %42 = tpu.matmul %32, %41, %cst_17 {dimension_numbers = #tpu.dot_dimension_numbers<[1], [0], [0], [1], [0, 0, 1, 1], [], []>} : vector<32x32xf32>, vector<32x64xf32>, vector<32x64xf32> -> vector<32x64xf32>
    %43 = arith.addf %39, %42 : vector<32x64xf32>
    %c0_18 = arith.constant 0 : index
    %c0_19 = arith.constant 0 : index
    %44 = vector.load %arg3[%c0_18, %c0_19] : memref<1x64xf32, #tpu.memory_space<vmem>>, vector<1x64xf32>
    %45 = vector.broadcast %44 : vector<1x64xf32> to vector<32x64xf32>
    %46 = arith.addf %43, %45 : vector<32x64xf32>
    %cst_20 = arith.constant dense<0.000000e+00> : vector<32xf32>
    %47 = vector.multi_reduction <add>, %46, %cst_20 [1] : vector<32x64xf32> to vector<32xf32>
    %48 = vector.shape_cast %47 : vector<32xf32> to vector<32x1xf32>
    %cst_21 = arith.constant 6.400000e+01 : f32
    %49 = vector.broadcast %cst_21 : f32 to vector<32x1xf32>
    %50 = arith.divf %48, %49 : vector<32x1xf32>
    %51 = vector.broadcast %50 : vector<32x1xf32> to vector<32x64xf32>
    %52 = arith.subf %46, %51 : vector<32x64xf32>
    %53 = arith.mulf %52, %52 : vector<32x64xf32>
    %cst_22 = arith.constant dense<0.000000e+00> : vector<32xf32>
    %54 = vector.multi_reduction <add>, %53, %cst_22 [1] : vector<32x64xf32> to vector<32xf32>
    %55 = vector.shape_cast %54 : vector<32xf32> to vector<32x1xf32>
    %cst_23 = arith.constant 6.400000e+01 : f32
    %56 = vector.broadcast %cst_23 : f32 to vector<32x1xf32>
    %57 = arith.divf %55, %56 : vector<32x1xf32>
    %cst_24 = arith.constant 9.99999974E-6 : f32
    %58 = vector.broadcast %cst_24 : f32 to vector<32x1xf32>
    %59 = arith.addf %57, %58 : vector<32x1xf32>
    %60 = math.rsqrt %59 : vector<32x1xf32>
    %61 = vector.broadcast %60 : vector<32x1xf32> to vector<32x64xf32>
    %62 = arith.mulf %52, %61 : vector<32x64xf32>
    %c0_25 = arith.constant 0 : index
    %c0_26 = arith.constant 0 : index
    %63 = vector.load %arg4[%c0_25, %c0_26] : memref<1x64xf32, #tpu.memory_space<vmem>>, vector<1x64xf32>
    %64 = vector.broadcast %63 : vector<1x64xf32> to vector<32x64xf32>
    %65 = arith.mulf %62, %64 : vector<32x64xf32>
    %c0_27 = arith.constant 0 : index
    %c0_28 = arith.constant 0 : index
    %66 = vector.load %arg5[%c0_27, %c0_28] : memref<1x64xf32, #tpu.memory_space<vmem>>, vector<1x64xf32>
    %67 = vector.broadcast %66 : vector<1x64xf32> to vector<32x64xf32>
    %68 = arith.addf %65, %67 : vector<32x64xf32>
    %cst_29 = arith.constant 0.000000e+00 : f32
    %69 = vector.broadcast %cst_29 : f32 to vector<32x64xf32>
    %70 = arith.maximumf %68, %69 : vector<32x64xf32>
    %c1_i32_30 = arith.constant 1 : i32
    %71 = tpu.dynamic_rotate %70 by %c1_i32_30 dim 0 : vector<32x64xf32>, i32 -> vector<32x64xf32>
    %c31_i32_31 = arith.constant 31 : i32
    %72 = tpu.dynamic_rotate %70 by %c31_i32_31 dim 0 : vector<32x64xf32>, i32 -> vector<32x64xf32>
    %73 = tpu.iota {dimensions = array<i32: 0>} : vector<32x1xi32>
    %c16_i32_32 = arith.constant 16 : i32
    %c0_i32_33 = arith.constant 0 : i32
    %74 = arith.cmpi eq, %c16_i32_32, %c0_i32_33 : i32
    %c1_i32_34 = arith.constant 1 : i32
    %75 = arith.select %74, %c1_i32_34, %c16_i32_32 : i32
    %76 = vector.broadcast %75 : i32 to vector<32x1xi32>
    %77 = arith.remsi %73, %76 : vector<32x1xi32>
    %c0_i32_35 = arith.constant 0 : i32
    %78 = vector.broadcast %c0_i32_35 : i32 to vector<32x1xi32>
    %79 = arith.cmpi ne, %77, %78 : vector<32x1xi32>
    %c0_i32_36 = arith.constant 0 : i32
    %80 = vector.broadcast %c0_i32_36 : i32 to vector<32x1xi32>
    %81 = arith.cmpi slt, %77, %80 : vector<32x1xi32>
    %c0_i32_37 = arith.constant 0 : i32
    %82 = arith.cmpi slt, %75, %c0_i32_37 : i32
    %83 = vector.broadcast %82 : i1 to vector<32x1xi1>
    %84 = vector.broadcast %83 : vector<32x1xi1> to vector<32x1xi1>
    %85 = arith.xori %81, %84 : vector<32x1xi1>
    %86 = arith.andi %85, %79 : vector<32x1xi1>
    %87 = vector.broadcast %75 : i32 to vector<32x1xi32>
    %88 = arith.addi %77, %87 : vector<32x1xi32>
    %89 = arith.select %86, %88, %77 : vector<32x1xi1>, vector<32x1xi32>
    %c0_i32_38 = arith.constant 0 : i32
    %90 = vector.broadcast %c0_i32_38 : i32 to vector<32x1xi32>
    %91 = arith.cmpi eq, %89, %90 : vector<32x1xi32>
    %cst_39 = arith.constant 0.000000e+00 : f32
    %92 = vector.shape_cast %91 : vector<32x1xi1> to vector<32x1xi1>
    %93 = vector.broadcast %92 : vector<32x1xi1> to vector<32x64xi1>
    %94 = vector.broadcast %cst_39 : f32 to vector<32x64xf32>
    %95 = arith.select %93, %94, %71 : vector<32x64xi1>, vector<32x64xf32>
    %c15_i32_40 = arith.constant 15 : i32
    %96 = vector.broadcast %c15_i32_40 : i32 to vector<32x1xi32>
    %97 = arith.cmpi eq, %89, %96 : vector<32x1xi32>
    %cst_41 = arith.constant 0.000000e+00 : f32
    %98 = vector.shape_cast %97 : vector<32x1xi1> to vector<32x1xi1>
    %99 = vector.broadcast %98 : vector<32x1xi1> to vector<32x64xi1>
    %100 = vector.broadcast %cst_41 : f32 to vector<32x64xf32>
    %101 = arith.select %99, %100, %72 : vector<32x64xi1>, vector<32x64xf32>
    %c0_42 = arith.constant 0 : index
    %c0_43 = arith.constant 0 : index
    %c0_44 = arith.constant 0 : index
    %102 = vector.load %arg6[%c0_42, %c0_43, %c0_44] : memref<3x64x64xf32, #tpu.memory_space<vmem>>, vector<1x64x64xf32>
    %103 = vector.shape_cast %102 : vector<1x64x64xf32> to vector<64x64xf32>
    %cst_45 = arith.constant dense<0.000000e+00> : vector<32x64xf32>
    %104 = tpu.matmul %95, %103, %cst_45 {dimension_numbers = #tpu.dot_dimension_numbers<[1], [0], [0], [1], [0, 0, 1, 1], [], []>} : vector<32x64xf32>, vector<64x64xf32>, vector<32x64xf32> -> vector<32x64xf32>
    %c1_46 = arith.constant 1 : index
    %c0_47 = arith.constant 0 : index
    %c0_48 = arith.constant 0 : index
    %105 = vector.load %arg6[%c1_46, %c0_47, %c0_48] : memref<3x64x64xf32, #tpu.memory_space<vmem>>, vector<1x64x64xf32>
    %106 = vector.shape_cast %105 : vector<1x64x64xf32> to vector<64x64xf32>
    %cst_49 = arith.constant dense<0.000000e+00> : vector<32x64xf32>
    %107 = tpu.matmul %70, %106, %cst_49 {dimension_numbers = #tpu.dot_dimension_numbers<[1], [0], [0], [1], [0, 0, 1, 1], [], []>} : vector<32x64xf32>, vector<64x64xf32>, vector<32x64xf32> -> vector<32x64xf32>
    %108 = arith.addf %104, %107 : vector<32x64xf32>
    %c2_50 = arith.constant 2 : index
    %c0_51 = arith.constant 0 : index
    %c0_52 = arith.constant 0 : index
    %109 = vector.load %arg6[%c2_50, %c0_51, %c0_52] : memref<3x64x64xf32, #tpu.memory_space<vmem>>, vector<1x64x64xf32>
    %110 = vector.shape_cast %109 : vector<1x64x64xf32> to vector<64x64xf32>
    %cst_53 = arith.constant dense<0.000000e+00> : vector<32x64xf32>
    %111 = tpu.matmul %101, %110, %cst_53 {dimension_numbers = #tpu.dot_dimension_numbers<[1], [0], [0], [1], [0, 0, 1, 1], [], []>} : vector<32x64xf32>, vector<64x64xf32>, vector<32x64xf32> -> vector<32x64xf32>
    %112 = arith.addf %108, %111 : vector<32x64xf32>
    %c0_54 = arith.constant 0 : index
    %c0_55 = arith.constant 0 : index
    %113 = vector.load %arg7[%c0_54, %c0_55] : memref<1x64xf32, #tpu.memory_space<vmem>>, vector<1x64xf32>
    %114 = vector.broadcast %113 : vector<1x64xf32> to vector<32x64xf32>
    %115 = arith.addf %112, %114 : vector<32x64xf32>
    %cst_56 = arith.constant dense<0.000000e+00> : vector<32xf32>
    %116 = vector.multi_reduction <add>, %115, %cst_56 [1] : vector<32x64xf32> to vector<32xf32>
    %117 = vector.shape_cast %116 : vector<32xf32> to vector<32x1xf32>
    %cst_57 = arith.constant 6.400000e+01 : f32
    %118 = vector.broadcast %cst_57 : f32 to vector<32x1xf32>
    %119 = arith.divf %117, %118 : vector<32x1xf32>
    %120 = vector.broadcast %119 : vector<32x1xf32> to vector<32x64xf32>
    %121 = arith.subf %115, %120 : vector<32x64xf32>
    %122 = arith.mulf %121, %121 : vector<32x64xf32>
    %cst_58 = arith.constant dense<0.000000e+00> : vector<32xf32>
    %123 = vector.multi_reduction <add>, %122, %cst_58 [1] : vector<32x64xf32> to vector<32xf32>
    %124 = vector.shape_cast %123 : vector<32xf32> to vector<32x1xf32>
    %cst_59 = arith.constant 6.400000e+01 : f32
    %125 = vector.broadcast %cst_59 : f32 to vector<32x1xf32>
    %126 = arith.divf %124, %125 : vector<32x1xf32>
    %cst_60 = arith.constant 9.99999974E-6 : f32
    %127 = vector.broadcast %cst_60 : f32 to vector<32x1xf32>
    %128 = arith.addf %126, %127 : vector<32x1xf32>
    %129 = math.rsqrt %128 : vector<32x1xf32>
    %130 = vector.broadcast %129 : vector<32x1xf32> to vector<32x64xf32>
    %131 = arith.mulf %121, %130 : vector<32x64xf32>
    %c0_61 = arith.constant 0 : index
    %c0_62 = arith.constant 0 : index
    %132 = vector.load %arg8[%c0_61, %c0_62] : memref<1x64xf32, #tpu.memory_space<vmem>>, vector<1x64xf32>
    %133 = vector.broadcast %132 : vector<1x64xf32> to vector<32x64xf32>
    %134 = arith.mulf %131, %133 : vector<32x64xf32>
    %c0_63 = arith.constant 0 : index
    %c0_64 = arith.constant 0 : index
    %135 = vector.load %arg9[%c0_63, %c0_64] : memref<1x64xf32, #tpu.memory_space<vmem>>, vector<1x64xf32>
    %136 = vector.broadcast %135 : vector<1x64xf32> to vector<32x64xf32>
    %137 = arith.addf %134, %136 : vector<32x64xf32>
    %cst_65 = arith.constant 0.000000e+00 : f32
    %138 = vector.broadcast %cst_65 : f32 to vector<32x64xf32>
    %139 = arith.maximumf %137, %138 : vector<32x64xf32>
    %c0_66 = arith.constant 0 : index
    %c0_67 = arith.constant 0 : index
    %140 = vector.load %arg10[%c0_66, %c0_67] : memref<1x64xf32, #tpu.memory_space<vmem>>, vector<1x64xf32>
    %c0_68 = arith.constant 0 : index
    %c0_69 = arith.constant 0 : index
    %141 = vector.load %arg11[%c0_68, %c0_69] : memref<1x1xf32, #tpu.memory_space<vmem>>, vector<1x1xf32>
    %142 = vector.extract_strided_slice %139 {offsets = [0, 0], sizes = [16, 64], strides = [1, 1]} : vector<32x64xf32> to vector<16x64xf32>
    %143 = vector.broadcast %140 : vector<1x64xf32> to vector<16x64xf32>
    %144 = arith.mulf %142, %143 : vector<16x64xf32>
    %cst_70 = arith.constant dense<0.000000e+00> : vector<16xf32>
    %145 = vector.multi_reduction <add>, %144, %cst_70 [1] : vector<16x64xf32> to vector<16xf32>
    %146 = vector.shape_cast %145 : vector<16xf32> to vector<16x1xf32>
    %147 = vector.broadcast %141 : vector<1x1xf32> to vector<16x1xf32>
    %148 = arith.addf %146, %147 : vector<16x1xf32>
    %149 = vector.shape_cast %148 : vector<16x1xf32> to vector<16xf32>
    %cst_71 = arith.constant 0.000000e+00 : f32
    %150 = vector.broadcast %cst_71 : f32 to vector<16xf32>
    %151 = arith.maximumf %149, %150 : vector<16xf32>
    %c0_72 = arith.constant 0 : index
    %c0_73 = arith.constant 0 : index
    %c0_74 = arith.constant 0 : index
    %152 = vector.load %arg12[%c0_72, %c0_73, %c0_74] : memref<1x2x16xf32, #tpu.memory_space<vmem>>, vector<1x1x16xf32>
    %153 = vector.shape_cast %152 : vector<1x1x16xf32> to vector<16xf32>
    %154 = vector.shape_cast %151 : vector<16xf32> to vector<1x1x16xf32>
    tpu.vector_store %arg12[%c0_72, %c0_73, %c0_74], %154 {strides = array<i32>} : memref<1x2x16xf32, #tpu.memory_space<vmem>>, vector<1x1x16xf32>,
    %155 = vector.extract_strided_slice %139 {offsets = [16, 0], sizes = [16, 64], strides = [1, 1]} : vector<32x64xf32> to vector<16x64xf32>
    %156 = vector.broadcast %140 : vector<1x64xf32> to vector<16x64xf32>
    %157 = arith.mulf %155, %156 : vector<16x64xf32>
    %cst_75 = arith.constant dense<0.000000e+00> : vector<16xf32>
    %158 = vector.multi_reduction <add>, %157, %cst_75 [1] : vector<16x64xf32> to vector<16xf32>
    %159 = vector.shape_cast %158 : vector<16xf32> to vector<16x1xf32>
    %160 = vector.broadcast %141 : vector<1x1xf32> to vector<16x1xf32>
    %161 = arith.addf %159, %160 : vector<16x1xf32>
    %162 = vector.shape_cast %161 : vector<16x1xf32> to vector<16xf32>
    %cst_76 = arith.constant 0.000000e+00 : f32
    %163 = vector.broadcast %cst_76 : f32 to vector<16xf32>
    %164 = arith.maximumf %162, %163 : vector<16xf32>
    %c0_77 = arith.constant 0 : index
    %c1_78 = arith.constant 1 : index
    %c0_79 = arith.constant 0 : index
    %165 = vector.load %arg12[%c0_77, %c1_78, %c0_79] : memref<1x2x16xf32, #tpu.memory_space<vmem>>, vector<1x1x16xf32>
    %166 = vector.shape_cast %165 : vector<1x1x16xf32> to vector<16xf32>
    %167 = vector.shape_cast %164 : vector<16xf32> to vector<1x1x16xf32>
    tpu.vector_store %arg12[%c0_77, %c1_78, %c0_79], %167 {strides = array<i32>} : memref<1x2x16xf32, #tpu.memory_space<vmem>>, vector<1x1x16xf32>,
    return
  }
  func.func @transform_0(%arg0: i32) -> (i32, i32, i32) {
    %c0_i32 = arith.constant 0 : i32
    %c0_i32_0 = arith.constant 0 : i32
    %c0_i32_1 = arith.constant 0 : i32
    return %arg0, %c0_i32, %c0_i32_0 : i32, i32, i32
  }
  func.func @transform_1(%arg0: i32) -> (i32, i32, i32) {
    %c0_i32 = arith.constant 0 : i32
    %c0_i32_0 = arith.constant 0 : i32
    %c0_i32_1 = arith.constant 0 : i32
    %c0_i32_2 = arith.constant 0 : i32
    return %c0_i32, %c0_i32_0, %c0_i32_1 : i32, i32, i32
  }
  func.func @transform_2(%arg0: i32) -> (i32, i32) {
    %c0_i32 = arith.constant 0 : i32
    %c0_i32_0 = arith.constant 0 : i32
    %c0_i32_1 = arith.constant 0 : i32
    return %c0_i32, %c0_i32_0 : i32, i32
  }
  func.func @transform_3(%arg0: i32) -> (i32, i32) {
    %c0_i32 = arith.constant 0 : i32
    %c0_i32_0 = arith.constant 0 : i32
    %c0_i32_1 = arith.constant 0 : i32
    return %c0_i32, %c0_i32_0 : i32, i32
  }
  func.func @transform_4(%arg0: i32) -> (i32, i32) {
    %c0_i32 = arith.constant 0 : i32
    %c0_i32_0 = arith.constant 0 : i32
    %c0_i32_1 = arith.constant 0 : i32
    return %c0_i32, %c0_i32_0 : i32, i32
  }
  func.func @transform_5(%arg0: i32) -> (i32, i32, i32) {
    %c0_i32 = arith.constant 0 : i32
    %c0_i32_0 = arith.constant 0 : i32
    %c0_i32_1 = arith.constant 0 : i32
    %c0_i32_2 = arith.constant 0 : i32
    return %c0_i32, %c0_i32_0, %c0_i32_1 : i32, i32, i32
  }
  func.func @transform_6(%arg0: i32) -> (i32, i32) {
    %c0_i32 = arith.constant 0 : i32
    %c0_i32_0 = arith.constant 0 : i32
    %c0_i32_1 = arith.constant 0 : i32
    return %c0_i32, %c0_i32_0 : i32, i32
  }
  func.func @transform_7(%arg0: i32) -> (i32, i32) {
    %c0_i32 = arith.constant 0 : i32
    %c0_i32_0 = arith.constant 0 : i32
    %c0_i32_1 = arith.constant 0 : i32
    return %c0_i32, %c0_i32_0 : i32, i32
  }
  func.func @transform_8(%arg0: i32) -> (i32, i32) {
    %c0_i32 = arith.constant 0 : i32
    %c0_i32_0 = arith.constant 0 : i32
    %c0_i32_1 = arith.constant 0 : i32
    return %c0_i32, %c0_i32_0 : i32, i32
  }
  func.func @transform_9(%arg0: i32) -> (i32, i32) {
    %c0_i32 = arith.constant 0 : i32
    %c0_i32_0 = arith.constant 0 : i32
    %c0_i32_1 = arith.constant 0 : i32
    return %c0_i32, %c0_i32_0 : i32, i32
  }
  func.func @transform_10(%arg0: i32) -> (i32, i32) {
    %c0_i32 = arith.constant 0 : i32
    %c0_i32_0 = arith.constant 0 : i32
    %c0_i32_1 = arith.constant 0 : i32
    return %c0_i32, %c0_i32_0 : i32, i32
  }
  func.func @transform_11(%arg0: i32) -> (i32, i32, i32) {
    %c0_i32 = arith.constant 0 : i32
    %c0_i32_0 = arith.constant 0 : i32
    %c0_i32_1 = arith.constant 0 : i32
    return %arg0, %c0_i32, %c0_i32_0 : i32, i32, i32
  }
}

</mosaic_0001>

<llo_original>
// kernel: tpu_custom_call.1
$region0: #{tpu_custom_call.1}
  #allocation0 [shape = 'u32[]', space=smem, size = 0x4, offset = 0x4, fixed_abs, tag = 'smem constant byte address 0x4 - core index']
  #allocation1 [shape = 'u32[72,128]{1,0:T(1,128)}', space=vmem, size = 0x9000, scoped, tag = 'internal scratch']
  #allocation2 [shape = 'f32[1,1]{1,0:T(1,128)S(1)}', space=vmem, size = 0x200, scoped, tag = 'scoped memory for tpu_custom_call.1']
  %s0 = inlined_call_operand.hbm [shape: f32[1,32,32], index: 0, kind: input, shape index: {}]
  %s1 = inlined_call_operand.hbm [shape: f32[3,32,64], index: 1, kind: input, shape index: {}]
  %s2 = inlined_call_operand.vmem [shape: f32[1,64], index: 2, kind: input, shape index: {}]
  %s3 = inlined_call_operand.vmem [shape: f32[1,64], index: 3, kind: input, shape index: {}]
  %s4 = inlined_call_operand.vmem [shape: f32[1,64], index: 4, kind: input, shape index: {}]
  %s5 = inlined_call_operand.hbm [shape: f32[3,64,64], index: 5, kind: input, shape index: {}]
  %s6 = inlined_call_operand.vmem [shape: f32[1,64], index: 6, kind: input, shape index: {}]
  %s7 = inlined_call_operand.vmem [shape: f32[1,64], index: 7, kind: input, shape index: {}]
  %s8 = inlined_call_operand.vmem [shape: f32[1,64], index: 8, kind: input, shape index: {}]
  %s9 = inlined_call_operand.vmem [shape: f32[1,64], index: 9, kind: input, shape index: {}]
  %s10 = inlined_call_operand.<no memory space> [shape: f32[1,1], index: 10, kind: input, shape index: {}]
  %s11 = inlined_call_operand.hbm [shape: f32[1,2,16], index: 11, kind: output, shape index: {}]
  %s12 = sld [smem:[#allocation0]]
  $region66: #{tpu_custom_call.1} parent=0
    _
  %s14 = ssub.s32 1, %s12
  %s15 = scalar_select 0, %s14, %s12
  %v16 = vstv %s10
  %17 = vst [vmem:[#allocation2] sm:$0x1] %v16
  $region1: #{tpu_custom_call.1} parent=0
    #allocation3 [shape = 'u8[16384]{0}', space=vmem, size = 0x4000, scoped, tag = 'input window, operand 0, single buffered']
    #allocation4 [shape = 's32[1]{0}', space=sflag, size = 0x4, scoped, tag = 'scoped memory for tpu_custom_call.1']
    #allocation5 [shape = 's32[1]{0}', space=sflag, size = 0x4, scoped, tag = 'scoped memory for tpu_custom_call.1']
    #allocation6 [shape = 'u8[49152]{0}', space=vmem, size = 0xc000, scoped, tag = 'input window, operand 1, single buffered']
    #allocation7 [shape = 's32[1]{0}', space=sflag, size = 0x4, scoped, tag = 'scoped memory for tpu_custom_call.1']
    #allocation8 [shape = 'u8[98304]{0}', space=vmem, size = 0x18000, scoped, tag = 'input window, operand 5, single buffered']
    #allocation9 [shape = 'u8[1024]{0}', space=vmem, size = 0x400, scoped, tag = 'output window, operand 0, single buffered']
    %18 = vsyncpa [#allocation4], 0
    %19 = vsyncpa [#allocation7], 0
    %20 = vsyncpa [#allocation5], 0
    // Predicated region
    $region2: #{tpu_custom_call.1} parent=1 // pred_check
      _
    $region3: #{tpu_custom_call.1} parent=1 // pred_check_branch
      %22 = sbr.rel (0) target = $region5
    $region4: #{tpu_custom_call.1} parent=1 // pred_region
      %24 = vsyncadd [#allocation4], 0
      %s25 = sshll.u32 %s0, 4
      %s26 = int_to_ptr.hbm [resolvable:$true] %s25
      %s27 = sshll.u32 [#allocation3], 4
      %s28 = int_to_ptr.vmem [resolvable:$true] %s27
      %33 = dma.hbm_to_vmem [thread:$0]  %s26, 512, %s28, [#allocation4], 128, 128, 8
    $region5: #{tpu_custom_call.1} parent=1 // pred_fallthru
      _
    // Predicated region
    $region6: #{tpu_custom_call.1} parent=1 // pred_check
      _
    $region7: #{tpu_custom_call.1} parent=1 // pred_check_branch
      %35 = sbr.rel (0) target = $region9
    $region8: #{tpu_custom_call.1} parent=1 // pred_region
      %37 = vsyncadd [#allocation7], 0
      %s38 = sshll.u32 %s1, 4
      %s39 = int_to_ptr.hbm [resolvable:$true] %s38
      %s40 = sshll.u32 [#allocation6], 4
      %s41 = int_to_ptr.vmem [resolvable:$true] %s40
      %46 = dma.hbm_to_vmem [thread:$0]  %s39, 1536, %s41, [#allocation7], 128, 128, 8
    $region9: #{tpu_custom_call.1} parent=1 // pred_fallthru
      _
    // Predicated region
    $region10: #{tpu_custom_call.1} parent=1 // pred_check
      _
    $region11: #{tpu_custom_call.1} parent=1 // pred_check_branch
      %48 = sbr.rel (0) target = $region13
    $region12: #{tpu_custom_call.1} parent=1 // pred_region
      _
    $region13: #{tpu_custom_call.1} parent=1 // pred_fallthru
      _
    // Predicated region
    $region14: #{tpu_custom_call.1} parent=1 // pred_check
      _
    $region15: #{tpu_custom_call.1} parent=1 // pred_check_branch
      %50 = sbr.rel (0) target = $region17
    $region16: #{tpu_custom_call.1} parent=1 // pred_region
      _
    $region17: #{tpu_custom_call.1} parent=1 // pred_fallthru
      _
    // Predicated region
    $region18: #{tpu_custom_call.1} parent=1 // pred_check
      _
    $region19: #{tpu_custom_call.1} parent=1 // pred_check_branch
      %52 = sbr.rel (0) target = $region21
    $region20: #{tpu_custom_call.1} parent=1 // pred_region
      _
    $region21: #{tpu_custom_call.1} parent=1 // pred_fallthru
      _
    // Predicated region
    $region22: #{tpu_custom_call.1} parent=1 // pred_check
      _
    $region23: #{tpu_custom_call.1} parent=1 // pred_check_branch
      %54 = sbr.rel (0) target = $region25
    $region24: #{tpu_custom_call.1} parent=1 // pred_region
      %56 = vsyncadd [#allocation7], 0
      %s57 = sshll.u32 %s5, 4
      %s58 = int_to_ptr.hbm [resolvable:$true] %s57
      %s59 = sshll.u32 [#allocation8], 4
      %s60 = int_to_ptr.vmem [resolvable:$true] %s59
      %65 = dma.hbm_to_vmem [thread:$0]  %s58, 3072, %s60, [#allocation7], 128, 128, 8
    $region25: #{tpu_custom_call.1} parent=1 // pred_fallthru
      _
    // Predicated region
    $region26: #{tpu_custom_call.1} parent=1 // pred_check
      _
    $region27: #{tpu_custom_call.1} parent=1 // pred_check_branch
      %67 = sbr.rel (0) target = $region29
    $region28: #{tpu_custom_call.1} parent=1 // pred_region
      _
    $region29: #{tpu_custom_call.1} parent=1 // pred_fallthru
      _
    // Predicated region
    $region30: #{tpu_custom_call.1} parent=1 // pred_check
      _
    $region31: #{tpu_custom_call.1} parent=1 // pred_check_branch
      %69 = sbr.rel (0) target = $region33
    $region32: #{tpu_custom_call.1} parent=1 // pred_region
      _
    $region33: #{tpu_custom_call.1} parent=1 // pred_fallthru
      _
    // Predicated region
    $region34: #{tpu_custom_call.1} parent=1 // pred_check
      _
    $region35: #{tpu_custom_call.1} parent=1 // pred_check_branch
      %71 = sbr.rel (0) target = $region37
    $region36: #{tpu_custom_call.1} parent=1 // pred_region
      _
    $region37: #{tpu_custom_call.1} parent=1 // pred_fallthru
      _
    // Predicated region
    $region38: #{tpu_custom_call.1} parent=1 // pred_check
      _
    $region39: #{tpu_custom_call.1} parent=1 // pred_check_branch
      %73 = sbr.rel (0) target = $region41
    $region40: #{tpu_custom_call.1} parent=1 // pred_region
      _
    $region41: #{tpu_custom_call.1} parent=1 // pred_fallthru
      _
    // Predicated region
    $region42: #{tpu_custom_call.1} parent=1 // pred_check
      _
    $region43: #{tpu_custom_call.1} parent=1 // pred_check_branch
      %75 = sbr.rel (0) target = $region45
    $region44: #{tpu_custom_call.1} parent=1 // pred_region
      _
    $region45: #{tpu_custom_call.1} parent=1 // pred_fallthru
      _
    // Predicated region
    $region46: #{tpu_custom_call.1} parent=1 // pred_check
      _
    $region47: #{tpu_custom_call.1} parent=1 // pred_check_branch
      %77 = sbr.rel (0) target = $region49
    $region48: #{tpu_custom_call.1} parent=1 // pred_region
      %79 = dma.done [#allocation4], 512
    $region49: #{tpu_custom_call.1} parent=1 // pred_fallthru
      _
    // Predicated region
    $region50: #{tpu_custom_call.1} parent=1 // pred_check
      _
    $region51: #{tpu_custom_call.1} parent=1 // pred_check_branch
      %81 = sbr.rel (0) target = $region53
    $region52: #{tpu_custom_call.1} parent=1 // pred_region
      %83 = dma.done [#allocation7], 1536
    $region53: #{tpu_custom_call.1} parent=1 // pred_fallthru
      _
    // Predicated region
    $region54: #{tpu_custom_call.1} parent=1 // pred_check
      _
    $region55: #{tpu_custom_call.1} parent=1 // pred_check_branch
      %85 = sbr.rel (0) target = $region57
    $region56: #{tpu_custom_call.1} parent=1 // pred_region
      %87 = dma.done [#allocation7], 3072
    $region57: #{tpu_custom_call.1} parent=1 // pred_fallthru
      _
    %v88 = vld [vmem:[#allocation3] sm:$0xff]
    %v89 = vld [vmem:[#allocation3 + $0x8] sm:$0xff]
    %v90 = vld [vmem:[#allocation3 + $0x10] sm:$0xff]
    %v91 = vld [vmem:[#allocation3 + $0x18] sm:$0xff]
    %v92 = vrot.slane %v88, 7
    %v93 = vrot.slane %v89, 7
    %v94 = vrot.slane %v90, 7
    %v95 = vrot.slane %v91, 7
    %v96 = vlaneseq
    %v97 = vshrl.u32 %v96, 7
    %vm98 = vcmp.lt.s32.totalorder %v97, 1
    %v99 = vsel %vm98, %v94, %v95
    %v100 = vsel %vm98, %v93, %v94
    %v101 = vsel %vm98, %v92, %v93
    %v102 = vsel %vm98, %v95, %v92
    %v103 = vrot.slane %v88, 1
    %v104 = vrot.slane %v89, 1
    %v105 = vrot.slane %v90, 1
    %v106 = vrot.slane %v91, 1
    %vm107 = vcmp.lt.s32.totalorder %v97, 7
    %v108 = vsel %vm107, %v105, %v106
    %v109 = vsel %vm107, %v104, %v105
    %v110 = vsel %vm107, %v103, %v104
    %v111 = vsel %vm107, %v106, %v103
    %v112 = vadd.s32 %v97, 8
    %v113 = vadd.s32 %v97, 16
    %v114 = vadd.s32 %v97, 24
    %vm115 = vcmp.lt.s32.totalorder %v97, 0
    %v116 = vsub.s32 0, %v97
    %v117 = vsel %vm115, %v116, %v97
    %v118 = vshrl.u32 %v117, 4
    %v119 = vand.u32 %v117, 15
    %v120 = vsub.s32 0, %v119
    %v121 = vsel %vm115, %v120, %v119
    %vm122 = vcmp.lt.s32.totalorder %v112, 0
    %v123 = vsub.s32 0, %v112
    %v124 = vsel %vm122, %v123, %v112
    %v125 = vshrl.u32 %v124, 4
    %v126 = vand.u32 %v124, 15
    %v127 = vsub.s32 0, %v126
    %v128 = vsel %vm122, %v127, %v126
    %vm129 = vcmp.lt.s32.totalorder %v113, 0
    %v130 = vsub.s32 0, %v113
    %v131 = vsel %vm129, %v130, %v113
    %v132 = vshrl.u32 %v131, 4
    %v133 = vand.u32 %v131, 15
    %v134 = vsub.s32 0, %v133
    %v135 = vsel %vm129, %v134, %v133
    %vm136 = vcmp.lt.s32.totalorder %v114, 0
    %v137 = vsub.s32 0, %v114
    %v138 = vsel %vm136, %v137, %v114
    %v139 = vshrl.u32 %v138, 4
    %v140 = vand.u32 %v138, 15
    %v141 = vsub.s32 0, %v140
    %v142 = vsel %vm136, %v141, %v140
    %vm143 = vcmp.ne.s32.totalorder %v121, 0
    %vm144 = vcmp.ne.s32.totalorder %v128, 0
    %vm145 = vcmp.ne.s32.totalorder %v135, 0
    %vm146 = vcmp.ne.s32.totalorder %v142, 0
    %vm147 = vcmp.lt.s32.totalorder %v121, 0
    %vm148 = vcmp.lt.s32.totalorder %v128, 0
    %vm149 = vcmp.lt.s32.totalorder %v135, 0
    %vm150 = vcmp.lt.s32.totalorder %v142, 0
    %vm151 = vmand %vm147, %vm143
    %vm152 = vmand %vm148, %vm144
    %vm153 = vmand %vm149, %vm145
    %vm154 = vmand %vm150, %vm146
    %v155 = vadd.s32 %v121, 16
    %v156 = vadd.s32 %v128, 16
    %v157 = vadd.s32 %v135, 16
    %v158 = vadd.s32 %v142, 16
    %v159 = vsel %vm151, %v155, %v121
    %v160 = vsel %vm152, %v156, %v128
    %v161 = vsel %vm153, %v157, %v135
    %v162 = vsel %vm154, %v158, %v142
    %vm163 = vcmp.eq.s32.totalorder %v159, 0
    %vm164 = vcmp.eq.s32.totalorder %v160, 0
    %vm165 = vcmp.eq.s32.totalorder %v161, 0
    %vm166 = vcmp.eq.s32.totalorder %v162, 0
    %v167 = vsel %vm163, 1, 0
    %v168 = vsel %vm164, 1, 0
    %v169 = vsel %vm165, 1, 0
    %v170 = vsel %vm166, 1, 0
    %vm171 = vcmp.eq.s32.totalorder %v167, 1
    %vm172 = vcmp.eq.s32.totalorder %v168, 1
    %vm173 = vcmp.eq.s32.totalorder %v169, 1
    %vm174 = vcmp.eq.s32.totalorder %v170, 1
    %v175 = vsel %vm171, 0.0, %v102
    %v176 = vsel %vm172, 0.0, %v101
    %v177 = vsel %vm173, 0.0, %v100
    %v178 = vsel %vm174, 0.0, %v99
    %vm179 = vcmp.eq.s32.totalorder %v159, 15
    %vm180 = vcmp.eq.s32.totalorder %v160, 15
    %vm181 = vcmp.eq.s32.totalorder %v161, 15
    %vm182 = vcmp.eq.s32.totalorder %v162, 15
    %v183 = vsel %vm179, 1, 0
    %v184 = vsel %vm180, 1, 0
    %v185 = vsel %vm181, 1, 0
    %v186 = vsel %vm182, 1, 0
    %vm187 = vcmp.eq.s32.totalorder %v183, 1
    %vm188 = vcmp.eq.s32.totalorder %v184, 1
    %vm189 = vcmp.eq.s32.totalorder %v185, 1
    %vm190 = vcmp.eq.s32.totalorder %v186, 1
    %v191 = vsel %vm187, 0.0, %v110
    %v192 = vsel %vm188, 0.0, %v109
    %v193 = vsel %vm189, 0.0, %v108
    %v194 = vsel %vm190, 0.0, %v111
    %v195 = vld [vmem:[#allocation6] sm:$0xff]
    %v196 = vld [vmem:[#allocation6 + $0x8] sm:$0xff]
    %v197 = vld [vmem:[#allocation6 + $0x10] sm:$0xff]
    %v198 = vld [vmem:[#allocation6 + $0x18] sm:$0xff]
    %s199 = scalar_lea.vmem [#allocation6], 32
    %v200 = vld [vmem:[%s199] sm:$0xff]
    %v201 = vld [vmem:[%s199 + $0x8] sm:$0xff]
    %v202 = vld [vmem:[%s199 + $0x10] sm:$0xff]
    %v203 = vld [vmem:[%s199 + $0x18] sm:$0xff]
    %vm204 = vcmask 261120
    %v206 = vsel %vm204, %v88, 0
    %v209 = vsel %vm204, %v89, 0
    %v212 = vsel %vm204, %v90, 0
    %v215 = vsel %vm204, %v91, 0
    %217 = vmatpush.msra.mxu0 0.0
    %218 = vmatpush.msra.mxu0 0.0
    %219 = vmatpush.msra.mxu0 0.0
    %220 = vmatpush.msra.mxu0 0.0
    %221 = vmatpush.msra.mxu0 0.0
    %222 = vmatpush.msra.mxu0 0.0
    %223 = vmatpush.msra.mxu0 0.0
    %224 = vmatpush.msra.mxu0 0.0
    %225 = vmatpush.msra.mxu0 0.0
    %226 = vmatpush.msra.mxu0 0.0
    %227 = vmatpush.msra.mxu0 0.0
    %228 = vmatpush.msra.mxu0 0.0
    %229 = vmatpush.msra.mxu0 %v203
    %230 = vmatpush.msra.mxu0 %v202
    %231 = vmatpush.msra.mxu0 %v201
    %232 = vmatpush.msra.mxu0 %v200
    %233 = vmatmul.f32.gmra.mxu0 %v206
    %v234 = vpop.f32.mrf.mxu0
    %v235 = vadd.f32 0.0, %v234
    %236 = vmatmul.f32.gmra.mxu0 %v209
    %v237 = vpop.f32.mrf.mxu0
    %v238 = vadd.f32 0.0, %v237
    %239 = vmatmul.f32.gmra.mxu0 %v212
    %v240 = vpop.f32.mrf.mxu0
    %v241 = vadd.f32 0.0, %v240
    %242 = vmatmul.f32.gmra.mxu0 %v215
    %v243 = vpop.f32.mrf.mxu0
    %v244 = vadd.f32 0.0, %v243
    %245 = vdwg.mxu0
    %v247 = vsel %vm204, %v175, 0
    %v250 = vsel %vm204, %v176, 0
    %v253 = vsel %vm204, %v177, 0
    %v256 = vsel %vm204, %v178, 0
    %258 = vmatpush.msra.mxu0 0.0
    %259 = vmatpush.msra.mxu0 0.0
    %260 = vmatpush.msra.mxu0 0.0
    %261 = vmatpush.msra.mxu0 0.0
    %262 = vmatpush.msra.mxu0 0.0
    %263 = vmatpush.msra.mxu0 0.0
    %264 = vmatpush.msra.mxu0 0.0
    %265 = vmatpush.msra.mxu0 0.0
    %266 = vmatpush.msra.mxu0 0.0
    %267 = vmatpush.msra.mxu0 0.0
    %268 = vmatpush.msra.mxu0 0.0
    %269 = vmatpush.msra.mxu0 0.0
    %270 = vmatpush.msra.mxu0 %v198
    %271 = vmatpush.msra.mxu0 %v197
    %272 = vmatpush.msra.mxu0 %v196
    %273 = vmatpush.msra.mxu0 %v195
    %274 = vmatmul.f32.gmra.mxu0 %v247
    %v275 = vpop.f32.mrf.mxu0
    %v276 = vadd.f32 %v235, %v275
    %277 = vmatmul.f32.gmra.mxu0 %v250
    %v278 = vpop.f32.mrf.mxu0
    %v279 = vadd.f32 %v238, %v278
    %280 = vmatmul.f32.gmra.mxu0 %v253
    %v281 = vpop.f32.mrf.mxu0
    %v282 = vadd.f32 %v241, %v281
    %283 = vmatmul.f32.gmra.mxu0 %v256
    %v284 = vpop.f32.mrf.mxu0
    %v285 = vadd.f32 %v244, %v284
    %286 = vdwg.mxu0
    %s287 = scalar_lea.vmem [#allocation6], 64
    %v288 = vld [vmem:[%s287] sm:$0xff]
    %v289 = vld [vmem:[%s287 + $0x8] sm:$0xff]
    %v290 = vld [vmem:[%s287 + $0x10] sm:$0xff]
    %v291 = vld [vmem:[%s287 + $0x18] sm:$0xff]
    %v293 = vsel %vm204, %v191, 0
    %v296 = vsel %vm204, %v192, 0
    %v299 = vsel %vm204, %v193, 0
    %v302 = vsel %vm204, %v194, 0
    %304 = vmatpush.msra.mxu0 0.0
    %305 = vmatpush.msra.mxu0 0.0
    %306 = vmatpush.msra.mxu0 0.0
    %307 = vmatpush.msra.mxu0 0.0
    %308 = vmatpush.msra.mxu0 0.0
    %309 = vmatpush.msra.mxu0 0.0
    %310 = vmatpush.msra.mxu0 0.0
    %311 = vmatpush.msra.mxu0 0.0
    %312 = vmatpush.msra.mxu0 0.0
    %313 = vmatpush.msra.mxu0 0.0
    %314 = vmatpush.msra.mxu0 0.0
    %315 = vmatpush.msra.mxu0 0.0
    %316 = vmatpush.msra.mxu0 %v291
    %317 = vmatpush.msra.mxu0 %v290
    %318 = vmatpush.msra.mxu0 %v289
    %319 = vmatpush.msra.mxu0 %v288
    %320 = vmatmul.f32.gmra.mxu0 %v293
    %v321 = vpop.f32.mrf.mxu0
    %v322 = vadd.f32 0.0, %v321
    %323 = vmatmul.f32.gmra.mxu0 %v296
    %v324 = vpop.f32.mrf.mxu0
    %v325 = vadd.f32 0.0, %v324
    %326 = vmatmul.f32.gmra.mxu0 %v299
    %v327 = vpop.f32.mrf.mxu0
    %v328 = vadd.f32 0.0, %v327
    %329 = vmatmul.f32.gmra.mxu0 %v302
    %v330 = vpop.f32.mrf.mxu0
    %v331 = vadd.f32 0.0, %v330
    %332 = vdwg.mxu0
    %v333 = vadd.f32 %v276, %v322
    %v334 = vadd.f32 %v279, %v325
    %v335 = vadd.f32 %v282, %v328
    %v336 = vadd.f32 %v285, %v331
    %v337 = vld [vmem:[%s2] sm:$0x1]
    %v339 = vperm.slane %v337, 0
    %v341 = vadd.f32 %v333, %v339
    %v342 = vadd.f32 %v334, %v339
    %v343 = vadd.f32 %v335, %v339
    %v344 = vadd.f32 %v336, %v339
    %vm345 = vcmask 523264
    %v346 = vsel %vm345, %v341, 0.0
    %347 = vadd.xlane.f32.xlu0 %v346
    %v348 = vpop.xlane.xlu0 %347
    %v349 = vsel %vm345, %v342, 0.0
    %350 = vadd.xlane.f32.xlu0 %v349
    %v351 = vpop.xlane.xlu0 %350
    %v352 = vsel %vm345, %v343, 0.0
    %353 = vadd.xlane.f32.xlu0 %v352
    %v354 = vpop.xlane.xlu0 %353
    %v355 = vsel %vm345, %v344, 0.0
    %356 = vadd.xlane.f32.xlu0 %v355
    %v357 = vpop.xlane.xlu0 %356
    %v358 = vrcp.pop 64.0
    %v359 = vmul.f32 64.0, %v358
    %v360 = vsub.f32 1.0, %v359
    %v361 = vmul.f32 %v358, %v360
    %v362 = vadd.f32 %v358, %v361
    %vm363 = vweird.f32 %v358
    %v364 = vsel %vm363, %v358, %v362
    %v365 = vmul.f32 %v348, %v364
    %v366 = vmul.f32 %v351, %v364
    %v367 = vmul.f32 %v354, %v364
    %v368 = vmul.f32 %v357, %v364
    %v369 = vsub.f32 %v341, %v365
    %v370 = vsub.f32 %v342, %v366
    %v371 = vsub.f32 %v343, %v367
    %v372 = vsub.f32 %v344, %v368
    %v373 = vmul.f32 %v369, %v369
    %v374 = vmul.f32 %v370, %v370
    %v375 = vmul.f32 %v371, %v371
    %v376 = vmul.f32 %v372, %v372
    %v377 = vsel %vm345, %v373, 0.0
    %378 = vadd.xlane.f32.xlu0 %v377
    %v379 = vpop.xlane.xlu0 %378
    %v380 = vsel %vm345, %v374, 0.0
    %381 = vadd.xlane.f32.xlu0 %v380
    %v382 = vpop.xlane.xlu0 %381
    %v383 = vsel %vm345, %v375, 0.0
    %384 = vadd.xlane.f32.xlu0 %v383
    %v385 = vpop.xlane.xlu0 %384
    %v386 = vsel %vm345, %v376, 0.0
    %387 = vadd.xlane.f32.xlu0 %v386
    %v388 = vpop.xlane.xlu0 %387
    %v389 = vmul.f32 %v379, %v364
    %v390 = vmul.f32 %v382, %v364
    %v391 = vmul.f32 %v385, %v364
    %v392 = vmul.f32 %v388, %v364
    %v393 = vadd.f32 %v389, 1e-05
    %v394 = vadd.f32 %v390, 1e-05
    %v395 = vadd.f32 %v391, 1e-05
    %v396 = vadd.f32 %v392, 1e-05
    %v397 = vrsqrt.pop %v393
    %v398 = vmul.f32 %v397, %v393
    %v399 = vmul.f32 %v398, %v397
    %v400 = vmul.f32 0.5, %v399
    %v401 = vsub.f32 1.5, %v400
    %v402 = vmul.f32 %v397, %v401
    %vm403 = vweird.f32 %v393
    %vm404 = vweird.f32 %v397
    %vm405 = vmor %vm403, %vm404
    %v406 = vsel %vm405, %v397, %v402
    %v407 = vrsqrt.pop %v394
    %v408 = vmul.f32 %v407, %v394
    %v409 = vmul.f32 %v408, %v407
    %v410 = vmul.f32 0.5, %v409
    %v411 = vsub.f32 1.5, %v410
    %v412 = vmul.f32 %v407, %v411
    %vm413 = vweird.f32 %v394
    %vm414 = vweird.f32 %v407
    %vm415 = vmor %vm413, %vm414
    %v416 = vsel %vm415, %v407, %v412
    %v417 = vrsqrt.pop %v395
    %v418 = vmul.f32 %v417, %v395
    %v419 = vmul.f32 %v418, %v417
    %v420 = vmul.f32 0.5, %v419
    %v421 = vsub.f32 1.5, %v420
    %v422 = vmul.f32 %v417, %v421
    %vm423 = vweird.f32 %v395
    %vm424 = vweird.f32 %v417
    %vm425 = vmor %vm423, %vm424
    %v426 = vsel %vm425, %v417, %v422
    %v427 = vrsqrt.pop %v396
    %v428 = vmul.f32 %v427, %v396
    %v429 = vmul.f32 %v428, %v427
    %v430 = vmul.f32 0.5, %v429
    %v431 = vsub.f32 1.5, %v430
    %v432 = vmul.f32 %v427, %v431
    %vm433 = vweird.f32 %v396
    %vm434 = vweird.f32 %v427
    %vm435 = vmor %vm433, %vm434
    %v436 = vsel %vm435, %v427, %v432
    %v437 = vmul.f32 %v369, %v406
    %v438 = vmul.f32 %v370, %v416
    %v439 = vmul.f32 %v371, %v426
    %v440 = vmul.f32 %v372, %v436
    %v441 = vld [vmem:[%s3] sm:$0x1]
    %v443 = vperm.slane %v441, 0
    %v445 = vmul.f32 %v437, %v443
    %v446 = vmul.f32 %v438, %v443
    %v447 = vmul.f32 %v439, %v443
    %v448 = vmul.f32 %v440, %v443
    %v449 = vld [vmem:[%s4] sm:$0x1]
    %v451 = vperm.slane %v449, 0
    %v453 = vadd.f32 %v445, %v451
    %v454 = vadd.f32 %v446, %v451
    %v455 = vadd.f32 %v447, %v451
    %v456 = vadd.f32 %v448, %v451
    %v457 = vmax.f32 %v453, 0.0
    %v458 = vmax.f32 %v454, 0.0
    %v459 = vmax.f32 %v455, 0.0
    %v460 = vmax.f32 %v456, 0.0
    %v461 = vrot.slane %v457, 7
    %v462 = vrot.slane %v458, 7
    %v463 = vrot.slane %v459, 7
    %v464 = vrot.slane %v460, 7
    %v465 = vsel %vm98, %v463, %v464
    %v466 = vsel %vm98, %v462, %v463
    %v467 = vsel %vm98, %v461, %v462
    %v468 = vsel %vm98, %v464, %v461
    %v469 = vrot.slane %v457, 1
    %v470 = vrot.slane %v458, 1
    %v471 = vrot.slane %v459, 1
    %v472 = vrot.slane %v460, 1
    %v473 = vsel %vm107, %v471, %v472
    %v474 = vsel %vm107, %v470, %v471
    %v475 = vsel %vm107, %v469, %v470
    %v476 = vsel %vm107, %v472, %v469
    %v477 = vsel %vm171, 0.0, %v468
    %v478 = vsel %vm172, 0.0, %v467
    %v479 = vsel %vm173, 0.0, %v466
    %v480 = vsel %vm174, 0.0, %v465
    %v481 = vsel %vm187, 0.0, %v475
    %v482 = vsel %vm188, 0.0, %v474
    %v483 = vsel %vm189, 0.0, %v473
    %v484 = vsel %vm190, 0.0, %v476
    %v485 = vld [vmem:[#allocation8] sm:$0xff]
    %v486 = vld [vmem:[#allocation8 + $0x8] sm:$0xff]
    %v487 = vld [vmem:[#allocation8 + $0x10] sm:$0xff]
    %v488 = vld [vmem:[#allocation8 + $0x18] sm:$0xff]
    %v489 = vld [vmem:[#allocation8 + $0x20] sm:$0xff]
    %v490 = vld [vmem:[#allocation8 + $0x28] sm:$0xff]
    %v491 = vld [vmem:[#allocation8 + $0x30] sm:$0xff]
    %v492 = vld [vmem:[#allocation8 + $0x38] sm:$0xff]
    %s493 = scalar_lea.vmem [#allocation8], 64
    %v494 = vld [vmem:[%s493] sm:$0xff]
    %v495 = vld [vmem:[%s493 + $0x8] sm:$0xff]
    %v496 = vld [vmem:[%s493 + $0x10] sm:$0xff]
    %v497 = vld [vmem:[%s493 + $0x18] sm:$0xff]
    %v498 = vld [vmem:[%s493 + $0x20] sm:$0xff]
    %v499 = vld [vmem:[%s493 + $0x28] sm:$0xff]
    %v500 = vld [vmem:[%s493 + $0x30] sm:$0xff]
    %v501 = vld [vmem:[%s493 + $0x38] sm:$0xff]
    %v503 = vsel %vm345, %v457, 0
    %v506 = vsel %vm345, %v458, 0
    %v509 = vsel %vm345, %v459, 0
    %v512 = vsel %vm345, %v460, 0
    %514 = vmatpush.msra.mxu0 0.0
    %515 = vmatpush.msra.mxu0 0.0
    %516 = vmatpush.msra.mxu0 0.0
    %517 = vmatpush.msra.mxu0 0.0
    %518 = vmatpush.msra.mxu0 0.0
    %519 = vmatpush.msra.mxu0 0.0
    %520 = vmatpush.msra.mxu0 0.0
    %521 = vmatpush.msra.mxu0 0.0
    %522 = vmatpush.msra.mxu0 %v501
    %523 = vmatpush.msra.mxu0 %v500
    %524 = vmatpush.msra.mxu0 %v499
    %525 = vmatpush.msra.mxu0 %v498
    %526 = vmatpush.msra.mxu0 %v497
    %527 = vmatpush.msra.mxu0 %v496
    %528 = vmatpush.msra.mxu0 %v495
    %529 = vmatpush.msra.mxu0 %v494
    %530 = vmatmul.f32.gmra.mxu0 %v503
    %v531 = vpop.f32.mrf.mxu0
    %v532 = vadd.f32 0.0, %v531
    %533 = vmatmul.f32.gmra.mxu0 %v506
    %v534 = vpop.f32.mrf.mxu0
    %v535 = vadd.f32 0.0, %v534
    %536 = vmatmul.f32.gmra.mxu0 %v509
    %v537 = vpop.f32.mrf.mxu0
    %v538 = vadd.f32 0.0, %v537
    %539 = vmatmul.f32.gmra.mxu0 %v512
    %v540 = vpop.f32.mrf.mxu0
    %v541 = vadd.f32 0.0, %v540
    %542 = vdwg.mxu0
    %v544 = vsel %vm345, %v477, 0
    %v547 = vsel %vm345, %v478, 0
    %v550 = vsel %vm345, %v479, 0
    %v553 = vsel %vm345, %v480, 0
    %555 = vmatpush.msra.mxu0 0.0
    %556 = vmatpush.msra.mxu0 0.0
    %557 = vmatpush.msra.mxu0 0.0
    %558 = vmatpush.msra.mxu0 0.0
    %559 = vmatpush.msra.mxu0 0.0
    %560 = vmatpush.msra.mxu0 0.0
    %561 = vmatpush.msra.mxu0 0.0
    %562 = vmatpush.msra.mxu0 0.0
    %563 = vmatpush.msra.mxu0 %v492
    %564 = vmatpush.msra.mxu0 %v491
    %565 = vmatpush.msra.mxu0 %v490
    %566 = vmatpush.msra.mxu0 %v489
    %567 = vmatpush.msra.mxu0 %v488
    %568 = vmatpush.msra.mxu0 %v487
    %569 = vmatpush.msra.mxu0 %v486
    %570 = vmatpush.msra.mxu0 %v485
    %571 = vmatmul.f32.gmra.mxu0 %v544
    %v572 = vpop.f32.mrf.mxu0
    %v573 = vadd.f32 %v532, %v572
    %574 = vmatmul.f32.gmra.mxu0 %v547
    %v575 = vpop.f32.mrf.mxu0
    %v576 = vadd.f32 %v535, %v575
    %577 = vmatmul.f32.gmra.mxu0 %v550
    %v578 = vpop.f32.mrf.mxu0
    %v579 = vadd.f32 %v538, %v578
    %580 = vmatmul.f32.gmra.mxu0 %v553
    %v581 = vpop.f32.mrf.mxu0
    %v582 = vadd.f32 %v541, %v581
    %583 = vdwg.mxu0
    %s584 = scalar_lea.vmem [#allocation8], 128
    %v585 = vld [vmem:[%s584] sm:$0xff]
    %v586 = vld [vmem:[%s584 + $0x8] sm:$0xff]
    %v587 = vld [vmem:[%s584 + $0x10] sm:$0xff]
    %v588 = vld [vmem:[%s584 + $0x18] sm:$0xff]
    %v589 = vld [vmem:[%s584 + $0x20] sm:$0xff]
    %v590 = vld [vmem:[%s584 + $0x28] sm:$0xff]
    %v591 = vld [vmem:[%s584 + $0x30] sm:$0xff]
    %v592 = vld [vmem:[%s584 + $0x38] sm:$0xff]
    %v594 = vsel %vm345, %v481, 0
    %v597 = vsel %vm345, %v482, 0
    %v600 = vsel %vm345, %v483, 0
    %v603 = vsel %vm345, %v484, 0
    %605 = vmatpush.msra.mxu0 0.0
    %606 = vmatpush.msra.mxu0 0.0
    %607 = vmatpush.msra.mxu0 0.0
    %608 = vmatpush.msra.mxu0 0.0
    %609 = vmatpush.msra.mxu0 0.0
    %610 = vmatpush.msra.mxu0 0.0
    %611 = vmatpush.msra.mxu0 0.0
    %612 = vmatpush.msra.mxu0 0.0
    %613 = vmatpush.msra.mxu0 %v592
    %614 = vmatpush.msra.mxu0 %v591
    %615 = vmatpush.msra.mxu0 %v590
    %616 = vmatpush.msra.mxu0 %v589
    %617 = vmatpush.msra.mxu0 %v588
    %618 = vmatpush.msra.mxu0 %v587
    %619 = vmatpush.msra.mxu0 %v586
    %620 = vmatpush.msra.mxu0 %v585
    %621 = vmatmul.f32.gmra.mxu0 %v594
    %v622 = vpop.f32.mrf.mxu0
    %v623 = vadd.f32 0.0, %v622
    %624 = vmatmul.f32.gmra.mxu0 %v597
    %v625 = vpop.f32.mrf.mxu0
    %v626 = vadd.f32 0.0, %v625
    %627 = vmatmul.f32.gmra.mxu0 %v600
    %v628 = vpop.f32.mrf.mxu0
    %v629 = vadd.f32 0.0, %v628
    %630 = vmatmul.f32.gmra.mxu0 %v603
    %v631 = vpop.f32.mrf.mxu0
    %v632 = vadd.f32 0.0, %v631
    %633 = vdwg.mxu0
    %v634 = vadd.f32 %v573, %v623
    %v635 = vadd.f32 %v576, %v626
    %v636 = vadd.f32 %v579, %v629
    %v637 = vadd.f32 %v582, %v632
    %v638 = vld [vmem:[%s6] sm:$0x1]
    %v640 = vperm.slane %v638, 0
    %v642 = vadd.f32 %v634, %v640
    %v643 = vadd.f32 %v635, %v640
    %v644 = vadd.f32 %v636, %v640
    %v645 = vadd.f32 %v637, %v640
    %v646 = vsel %vm345, %v642, 0.0
    %647 = vadd.xlane.f32.xlu0 %v646
    %v648 = vpop.xlane.xlu0 %647
    %v649 = vsel %vm345, %v643, 0.0
    %650 = vadd.xlane.f32.xlu0 %v649
    %v651 = vpop.xlane.xlu0 %650
    %v652 = vsel %vm345, %v644, 0.0
    %653 = vadd.xlane.f32.xlu0 %v652
    %v654 = vpop.xlane.xlu0 %653
    %v655 = vsel %vm345, %v645, 0.0
    %656 = vadd.xlane.f32.xlu0 %v655
    %v657 = vpop.xlane.xlu0 %656
    %v658 = vmul.f32 %v648, %v364
    %v659 = vmul.f32 %v651, %v364
    %v660 = vmul.f32 %v654, %v364
    %v661 = vmul.f32 %v657, %v364
    %v662 = vsub.f32 %v642, %v658
    %v663 = vsub.f32 %v643, %v659
    %v664 = vsub.f32 %v644, %v660
    %v665 = vsub.f32 %v645, %v661
    %v666 = vmul.f32 %v662, %v662
    %v667 = vmul.f32 %v663, %v663
    %v668 = vmul.f32 %v664, %v664
    %v669 = vmul.f32 %v665, %v665
    %v670 = vsel %vm345, %v666, 0.0
    %671 = vadd.xlane.f32.xlu0 %v670
    %v672 = vpop.xlane.xlu0 %671
    %v673 = vsel %vm345, %v667, 0.0
    %674 = vadd.xlane.f32.xlu0 %v673
    %v675 = vpop.xlane.xlu0 %674
    %v676 = vsel %vm345, %v668, 0.0
    %677 = vadd.xlane.f32.xlu0 %v676
    %v678 = vpop.xlane.xlu0 %677
    %v679 = vsel %vm345, %v669, 0.0
    %680 = vadd.xlane.f32.xlu0 %v679
    %v681 = vpop.xlane.xlu0 %680
    %v682 = vmul.f32 %v672, %v364
    %v683 = vmul.f32 %v675, %v364
    %v684 = vmul.f32 %v678, %v364
    %v685 = vmul.f32 %v681, %v364
    %v686 = vadd.f32 %v682, 1e-05
    %v687 = vadd.f32 %v683, 1e-05
    %v688 = vadd.f32 %v684, 1e-05
    %v689 = vadd.f32 %v685, 1e-05
    %v690 = vrsqrt.pop %v686
    %v691 = vmul.f32 %v690, %v686
    %v692 = vmul.f32 %v691, %v690
    %v693 = vmul.f32 0.5, %v692
    %v694 = vsub.f32 1.5, %v693
    %v695 = vmul.f32 %v690, %v694
    %vm696 = vweird.f32 %v686
    %vm697 = vweird.f32 %v690
    %vm698 = vmor %vm696, %vm697
    %v699 = vsel %vm698, %v690, %v695
    %v700 = vrsqrt.pop %v687
    %v701 = vmul.f32 %v700, %v687
    %v702 = vmul.f32 %v701, %v700
    %v703 = vmul.f32 0.5, %v702
    %v704 = vsub.f32 1.5, %v703
    %v705 = vmul.f32 %v700, %v704
    %vm706 = vweird.f32 %v687
    %vm707 = vweird.f32 %v700
    %vm708 = vmor %vm706, %vm707
    %v709 = vsel %vm708, %v700, %v705
    %v710 = vrsqrt.pop %v688
    %v711 = vmul.f32 %v710, %v688
    %v712 = vmul.f32 %v711, %v710
    %v713 = vmul.f32 0.5, %v712
    %v714 = vsub.f32 1.5, %v713
    %v715 = vmul.f32 %v710, %v714
    %vm716 = vweird.f32 %v688
    %vm717 = vweird.f32 %v710
    %vm718 = vmor %vm716, %vm717
    %v719 = vsel %vm718, %v710, %v715
    %v720 = vrsqrt.pop %v689
    %v721 = vmul.f32 %v720, %v689
    %v722 = vmul.f32 %v721, %v720
    %v723 = vmul.f32 0.5, %v722
    %v724 = vsub.f32 1.5, %v723
    %v725 = vmul.f32 %v720, %v724
    %vm726 = vweird.f32 %v689
    %vm727 = vweird.f32 %v720
    %vm728 = vmor %vm726, %vm727
    %v729 = vsel %vm728, %v720, %v725
    %v730 = vmul.f32 %v662, %v699
    %v731 = vmul.f32 %v663, %v709
    %v732 = vmul.f32 %v664, %v719
    %v733 = vmul.f32 %v665, %v729
    %v734 = vld [vmem:[%s7] sm:$0x1]
    %v736 = vperm.slane %v734, 0
    %v738 = vmul.f32 %v730, %v736
    %v739 = vmul.f32 %v731, %v736
    %v740 = vmul.f32 %v732, %v736
    %v741 = vmul.f32 %v733, %v736
    %v742 = vld [vmem:[%s8] sm:$0x1]
    %v744 = vperm.slane %v742, 0
    %v746 = vadd.f32 %v738, %v744
    %v747 = vadd.f32 %v739, %v744
    %v748 = vadd.f32 %v740, %v744
    %v749 = vadd.f32 %v741, %v744
    %v750 = vmax.f32 %v746, 0.0
    %v751 = vmax.f32 %v747, 0.0
    %v752 = vmax.f32 %v748, 0.0
    %v753 = vmax.f32 %v749, 0.0
    %v754 = vld [vmem:[%s9] sm:$0x1]
    %v755 = vld [vmem:[#allocation2] sm:$0x1]
    %v757 = vperm.slane %v754, 0
    %v759 = vmul.f32 %v750, %v757
    %v760 = vmul.f32 %v751, %v757
    %v761 = vsel %vm345, %v759, 0.0
    %762 = vadd.xlane.f32.xlu0 %v761
    %v763 = vpop.xlane.xlu0 %762
    %v764 = vsel %vm345, %v760, 0.0
    %765 = vadd.xlane.f32.xlu0 %v764
    %v766 = vpop.xlane.xlu0 %765
    %v768 = vperm.slane %v755, 0
    %v770 = vadd.f32 %v763, %v768
    %v771 = vadd.f32 %v766, %v768
    %v772 = vmax.f32 %v770, 0.0
    %v773 = vmax.f32 %v771, 0.0
    %776 = vset.pattern.permute.xlu0 0
    %777 = vperm.xlu0 %776, %v772
    %v778 = vpop.permute.xlu0 %777
    %779 = vset.pattern.permute.xlu0 0
    %780 = vperm.xlu0 %779, %v773
    %v781 = vpop.permute.xlu0 %780
    %v782 = vlaneseq
    %v783 = vand.u32 %v782, 127
    %v784 = vperm.slane %v778, %v783
    %v785 = vadd.s32 %v783, 4294967288
    %v786 = vperm.slane %v781, %v785
    %vm787 = vcmask 130112
    %v788 = vsel %vm787, %v786, %v784
    %vm790 = vcmask 122880
    %791 = vst.msk [vmem:[#allocation9] sm:$0x1] %vm790, %v788
    %v792 = vmul.f32 %v752, %v757
    %v793 = vmul.f32 %v753, %v757
    %v794 = vsel %vm345, %v792, 0.0
    %795 = vadd.xlane.f32.xlu0 %v794
    %v796 = vpop.xlane.xlu0 %795
    %v797 = vsel %vm345, %v793, 0.0
    %798 = vadd.xlane.f32.xlu0 %v797
    %v799 = vpop.xlane.xlu0 %798
    %v800 = vadd.f32 %v796, %v768
    %v801 = vadd.f32 %v799, %v768
    %v802 = vmax.f32 %v800, 0.0
    %v803 = vmax.f32 %v801, 0.0
    %806 = vset.pattern.permute.xlu0 0
    %807 = vperm.xlu0 %806, %v802
    %v808 = vpop.permute.xlu0 %807
    %809 = vset.pattern.permute.xlu0 0
    %810 = vperm.xlu0 %809, %v803
    %v811 = vpop.permute.xlu0 %810
    %v812 = vperm.slane %v808, %v783
    %v813 = vperm.slane %v811, %v785
    %v814 = vsel %vm787, %v813, %v812
    %816 = vst.msk [vmem:[#allocation9 + $0x1] sm:$0x1] %vm790, %v814
    // Predicated region
    $region58: #{tpu_custom_call.1} parent=1 // pred_check
      _
    $region59: #{tpu_custom_call.1} parent=1 // pred_check_branch
      %818 = sbr.rel (0) target = $region61
    $region60: #{tpu_custom_call.1} parent=1 // pred_region
      %820 = vsyncadd [#allocation5], 0
      %s822 = sshll.u32 [#allocation9], 4
      %s823 = int_to_ptr.vmem [resolvable:$true] %s822
      %s824 = sshll.u32 %s11, 4
      %s825 = int_to_ptr.hbm [resolvable:$true] %s824
      %827 = dma.vmem_to_hbm [thread:$0]  %s823, 32, %s825, [#allocation5]
    $region61: #{tpu_custom_call.1} parent=1 // pred_fallthru
      _
    // Predicated region
    $region62: #{tpu_custom_call.1} parent=1 // pred_check
      _
    $region63: #{tpu_custom_call.1} parent=1 // pred_check_branch
      %829 = sbr.rel (0) target = $region65
    $region64: #{tpu_custom_call.1} parent=1 // pred_region
      %831 = dma.done [#allocation5], 32
    $region65: #{tpu_custom_call.1} parent=1 // pred_fallthru
      _
    %832 = vsyncpa [#allocation4], 1
    %833 = vsyncpa [#allocation7], 1
    %834 = vsyncpa [#allocation5], 1

</llo_original>
